<compile_context>
chip_gen: v7x
topology: tpu7x:2x2x1
jax: 0.10.0
libtpu: 0.0.40
codegen_flags: <defaults>
</compile_context>

<pallas_src>
import functools
import math

import jax
import jax.numpy as jnp
from jax.experimental import pallas as pl
from jax.experimental.pallas import tpu as pltpu

_LANES = 128


def _selection_kernel(x_ref, o_ref, *, logit_threshold):
    # x_ref / o_ref: (block_rows, 128) tile of the flattened [N*2] feature
    # buffer.  Lane 2k holds f0 of point k, lane 2k+1 holds f1 of the same
    # point; pairs never straddle a 128-lane row because 128 is even, so the
    # lane-roll trick is exact regardless of block boundaries.  For a ragged
    # last grid block, out-of-range rows compute on garbage but their stores
    # are masked by Pallas.
    x = x_ref[...].astype(jnp.float32)

    # d[i] = x[i + 1] - x[i]; on even lanes this is (f1 - f0) of the point
    # that owns the lane pair.  Lane 127 wraps around but is odd -> unused.
    d = pltpu.roll(x, _LANES - 1, axis=1) - x
    hit = jnp.where(d > logit_threshold, jnp.float32(1.0), jnp.float32(0.0))

    lane = jax.lax.broadcasted_iota(jnp.int32, x.shape, 1)
    is_f0_lane = (lane & 1) == 0
    # Broadcast each even-lane result to its odd partner lane with one roll.
    result = jnp.where(is_f0_lane, hit, pltpu.roll(hit, 1, axis=1))
    o_ref[...] = result.astype(o_ref.dtype)


def _logit_compare_small(features, logit_threshold):
    """Trivial XLA path for tiny residuals (< 64 points)."""
    d = features[:, 1].astype(jnp.float32) - features[:, 0].astype(jnp.float32)
    mask = (d > logit_threshold).astype(features.dtype)
    return jnp.ones_like(features) * mask[:, None]


def _selection_pallas(features, logit_threshold, block_rows):
    """features: [N, 2] with N % 64 == 0 (so N*2 % 128 == 0). No pad/slice."""
    N, C = features.shape
    total = N * C
    rows = total // _LANES

    # dtype-aware sublane alignment: (8,128) min tile for 4-byte dtypes,
    # (16,128) for 2-byte (bf16), (32,128) for 1-byte.
    sublane = max(8, 32 // jnp.dtype(features.dtype).itemsize)

    if rows <= sublane:
        # Single block equal to the full array dims (alignment exemption).
        block_rows = rows
    else:
        block_rows = min(block_rows, rows)
        block_rows = max(sublane, (block_rows // sublane) * sublane)
        if block_rows >= rows:
            # Split into >= 2 grid steps so "parallel" semantics can shard
            # blocks across both v7x TensorCores (and amortise nothing worse
            # than one extra ~0.35 us pipeline step elsewhere).
            half = -(-rows // 2)
            block_rows = max(sublane, -(-half // sublane) * sublane)
    grid = pl.cdiv(rows, block_rows)

    x2d = features.reshape(rows, _LANES)  # free: [N, 2] is contiguous row-major

    kernel = functools.partial(_selection_kernel, logit_threshold=logit_threshold)
    out2d = pl.pallas_call(
        kernel,
        out_shape=jax.ShapeDtypeStruct((rows, _LANES), features.dtype),
        grid_spec=pltpu.PrefetchScalarGridSpec(
            num_scalar_prefetch=0,
            grid=(grid,),
            in_specs=[pl.BlockSpec((block_rows, _LANES), lambda i: (i, 0))],
            out_specs=pl.BlockSpec((block_rows, _LANES), lambda i: (i, 0)),
        ),
        compiler_params=pltpu.CompilerParams(
            dimension_semantics=("parallel",),
            vmem_limit_bytes=32 * 1024 * 1024,
        ),
    )(x2d)
    return out2d.reshape(N, C)


def selection_forward(features, threshold=0.5, block_rows=4096):
    """features: [N, 2] float array of class scores. Returns [N, 2] of 0.0/1.0."""
    N, C = features.shape
    assert C == 2, "Selection thresholds a 2-class softmax (column 1 vs column 0)"
    # TODO(synk): general C > 2 would need f1 - logsumexp(f) > log(t) instead.

    # Degenerate thresholds: skip the kernel (and the HBM read) entirely.
    # (Differs from the reference only where softmax underflows to exactly 0/1.)
    if threshold <= 0.0:
        return jnp.ones_like(features)
    if threshold >= 1.0:
        return jnp.zeros_like(features)

    # softmax(f)[:, 1] > t  <=>  f1 - f0 > log(t / (1 - t)) for t in (0, 1).
    logit_threshold = math.log(threshold / (1.0 - threshold))

    points_per_row = _LANES // C  # 64 points per 128-lane row
    n_main = (N // points_per_row) * points_per_row

    if n_main == N:
        # Fast path: no pad, no slice, exactly one HBM read + one write.
        return _selection_pallas(features, logit_threshold, block_rows)
    if n_main == 0:
        # Fewer than 64 points: not worth a kernel launch.
        return _logit_compare_small(features, logit_threshold)

    # Residual path: kernel on the aligned prefix, trivial XLA on the <64-point
    # tail.  Avoids the whole-array pad + slice round trips of the old version.
    main = _selection_pallas(features[:n_main], logit_threshold, block_rows)
    tail = _logit_compare_small(features[n_main:], logit_threshold)
    return jnp.concatenate([main, tail], axis=0)


def _reference(features, threshold=0.5):
    p = jax.nn.softmax(features.astype(jnp.float32), axis=1)
    mask = (p[:, 1] > threshold).astype(features.dtype)
    return jnp.ones_like(features) * mask[:, None]


if __name__ == "__main__":
    # Selection has no learned parameters (only a threshold).
    key = jax.random.PRNGKey(0)
    N, C = 256, 2  # N sparse points, C = 2 class scores (as implied by [:, 1])
    scores_features = jax.random.normal(key, (N, C), dtype=jnp.float32)

    out = selection_forward(scores_features, threshold=0.5)
    out = jax.block_until_ready(out)

    ref = _reference(scores_features, threshold=0.5)
    assert out.shape == scores_features.shape
    assert out.dtype == scores_features.dtype
    assert bool(jnp.all(out == ref))

    # Also exercise the non-aligned (residual) path at a small odd size.
    N2 = 100  # not a multiple of 64 -> aligned-prefix kernel + tiny XLA tail
    scores2 = jax.random.normal(jax.random.PRNGKey(1), (N2, C), dtype=jnp.float32)
    out2 = jax.block_until_ready(selection_forward(scores2, threshold=0.5))
    ref2 = _reference(scores2, threshold=0.5)
    assert out2.shape == scores2.shape
    assert bool(jnp.all(out2 == ref2))

    print("KERNEL_OK")
</pallas_src>

<mosaic_0001>
module attributes {stable_mosaic.version = 11 : i64} {
  func.func @_selection_kernel(%arg0: i32, %arg1: memref<4x128xf32, #tpu.memory_space<vmem>>, %arg2: memref<4x128xf32, #tpu.memory_space<vmem>>) attributes {dimension_semantics = [#tpu.dimension_semantics<parallel>], iteration_bounds = array<i64: 1>, scalar_prefetch = 0 : i64, scratch_operands = 0 : i64, tpu.core_type = #tpu.core_type<tc>, window_params = [{transform_indices = @transform_0, window_bounds = array<i64: 4, 128>}, {transform_indices = @transform_1, window_bounds = array<i64: 4, 128>}]} {
    %c0 = arith.constant 0 : index
    %c0_0 = arith.constant 0 : index
    %0 = vector.load %arg1[%c0, %c0_0] : memref<4x128xf32, #tpu.memory_space<vmem>>, vector<4x128xf32>
    %c127_i32 = arith.constant 127 : i32
    %1 = tpu.dynamic_rotate %0 by %c127_i32 dim 1 : vector<4x128xf32>, i32 -> vector<4x128xf32>
    %2 = arith.subf %1, %0 : vector<4x128xf32>
    %cst = arith.constant 0.000000e+00 : f32
    %3 = vector.broadcast %cst : f32 to vector<4x128xf32>
    %4 = arith.cmpf ogt, %2, %3 : vector<4x128xf32>
    %cst_1 = arith.constant 1.000000e+00 : f32
    %cst_2 = arith.constant 0.000000e+00 : f32
    %5 = vector.broadcast %cst_1 : f32 to vector<4x128xf32>
    %6 = vector.broadcast %cst_2 : f32 to vector<4x128xf32>
    %7 = arith.select %4, %5, %6 : vector<4x128xi1>, vector<4x128xf32>
    %8 = tpu.iota {dimensions = array<i32: 1>} : vector<4x128xi32>
    %c1_i32 = arith.constant 1 : i32
    %9 = vector.broadcast %c1_i32 : i32 to vector<4x128xi32>
    %10 = arith.andi %8, %9 : vector<4x128xi32>
    %c0_i32 = arith.constant 0 : i32
    %11 = vector.broadcast %c0_i32 : i32 to vector<4x128xi32>
    %12 = arith.cmpi eq, %10, %11 : vector<4x128xi32>
    %c1_i32_3 = arith.constant 1 : i32
    %13 = tpu.dynamic_rotate %7 by %c1_i32_3 dim 1 : vector<4x128xf32>, i32 -> vector<4x128xf32>
    %14 = arith.select %12, %7, %13 : vector<4x128xi1>, vector<4x128xf32>
    %c0_4 = arith.constant 0 : index
    %c0_5 = arith.constant 0 : index
    %15 = vector.load %arg2[%c0_4, %c0_5] : memref<4x128xf32, #tpu.memory_space<vmem>>, vector<4x128xf32>
    tpu.vector_store %arg2[%c0_4, %c0_5], %14 {strides = array<i32>} : memref<4x128xf32, #tpu.memory_space<vmem>>, vector<4x128xf32>,
    return
  }
  func.func @transform_0(%arg0: i32) -> (i32, i32) {
    %c0_i32 = arith.constant 0 : i32
    %c0_i32_0 = arith.constant 0 : i32
    return %arg0, %c0_i32 : i32, i32
  }
  func.func @transform_1(%arg0: i32) -> (i32, i32) {
    %c0_i32 = arith.constant 0 : i32
    %c0_i32_0 = arith.constant 0 : i32
    return %arg0, %c0_i32 : i32, i32
  }
}

</mosaic_0001>

<llo_original>
// kernel: tpu_custom_call.1
$region0: #{tpu_custom_call.1}
  #allocation0 [shape = 'u32[]', space=smem, size = 0x4, offset = 0x4, fixed_abs, tag = 'smem constant byte address 0x4 - core index']
  #allocation1 [shape = 'u32[144,128]{1,0:T(1,128)}', space=vmem, size = 0x12000, scoped, tag = 'internal scratch']
  %s0 = inlined_call_operand.hbm [shape: f32[4,128], index: 0, kind: input, shape index: {}]
  %s1 = inlined_call_operand.hbm [shape: f32[4,128], index: 1, kind: output, shape index: {}]
  %s2 = sld [smem:[#allocation0]]
  $region18: #{tpu_custom_call.1} parent=0
    _
  %s4 = ssub.s32 1, %s2
  %s5 = scalar_select 0, %s4, %s2
  $region1: #{tpu_custom_call.1} parent=0
    #allocation2 [shape = 'u8[2048]{0}', space=vmem, size = 0x800, scoped, tag = 'input window, operand 0, single buffered']
    #allocation3 [shape = 's32[1]{0}', space=sflag, size = 0x4, scoped, tag = 'scoped memory for tpu_custom_call.1']
    #allocation4 [shape = 's32[1]{0}', space=sflag, size = 0x4, scoped, tag = 'scoped memory for tpu_custom_call.1']
    #allocation5 [shape = 'u8[2048]{0}', space=vmem, size = 0x800, scoped, tag = 'output window, operand 0, single buffered']
    %6 = vsyncpa [#allocation3], 0
    %7 = vsyncpa [#allocation4], 0
    // Predicated region
    $region2: #{tpu_custom_call.1} parent=1 // pred_check
      _
    $region3: #{tpu_custom_call.1} parent=1 // pred_check_branch
      %9 = sbr.rel (0) target = $region5
    $region4: #{tpu_custom_call.1} parent=1 // pred_region
      %s11 = ssub.s32 64, 64
      %12 = vsyncadd [#allocation3], %s11
      %s14 = sshll.u32 [#allocation2], 4
      %s15 = int_to_ptr.vmem [resolvable:$true] %s14
      %17 = dma.hbm_to_vmem [thread:$0]  %s0, 64, %s15, [#allocation3]
    $region5: #{tpu_custom_call.1} parent=1 // pred_fallthru
      _
    // Predicated region
    $region6: #{tpu_custom_call.1} parent=1 // pred_check
      _
    $region7: #{tpu_custom_call.1} parent=1 // pred_check_branch
      %19 = sbr.rel (0) target = $region9
    $region8: #{tpu_custom_call.1} parent=1 // pred_region
      %20 = dma.done [#allocation3], 64
    $region9: #{tpu_custom_call.1} parent=1 // pred_fallthru
      _
    %v21 = vld [vmem:[#allocation2] sm:$0xf]
    %22 = vrot.lane.b32.xlu0 %v21, 127
    %v23 = vpop.permute.xlu0 %22
    %v24 = vsub.f32 %v23, %v21
    %vm25 = vcmp.gt.f32.partialorder %v24, 0.0
    %v26 = vsel %vm25, 1.0, 0.0
    %v27 = vlaneseq
    %v28 = vand.u32 %v27, 127
    %v29 = vand.u32 %v28, 1
    %vm30 = vcmp.eq.s32.totalorder %v29, 0
    %31 = vrot.lane.b32.xlu0 %v26, 1
    %v32 = vpop.permute.xlu0 %31
    %v33 = vsel %vm30, %v26, %v32
    %34 = vst [vmem:[#allocation5] sm:$0xf] %v33
    // Predicated region
    $region10: #{tpu_custom_call.1} parent=1 // pred_check
      _
    $region11: #{tpu_custom_call.1} parent=1 // pred_check_branch
      %36 = sbr.rel (0) target = $region13
    $region12: #{tpu_custom_call.1} parent=1 // pred_region
      %s38 = ssub.s32 64, 64
      %39 = vsyncadd [#allocation4], %s38
      %s41 = sshll.u32 [#allocation5], 4
      %s42 = int_to_ptr.vmem [resolvable:$true] %s41
      %44 = dma.vmem_to_hbm [thread:$0]  %s42, 64, %s1, [#allocation4]
    $region13: #{tpu_custom_call.1} parent=1 // pred_fallthru
      _
    // Predicated region
    $region14: #{tpu_custom_call.1} parent=1 // pred_check
      _
    $region15: #{tpu_custom_call.1} parent=1 // pred_check_branch
      %46 = sbr.rel (0) target = $region17
    $region16: #{tpu_custom_call.1} parent=1 // pred_region
      %47 = dma.done [#allocation4], 64
    $region17: #{tpu_custom_call.1} parent=1 // pred_fallthru
      _
    %48 = vsyncpa [#allocation3], 1
    %49 = vsyncpa [#allocation4], 1

</llo_original>
